<compile_context>
chip_gen: v7x
topology: tpu7x:2x2x1
jax: 0.10.0
libtpu: 0.0.40
codegen_flags: <defaults>
</compile_context>

<pallas_src>
import math

import jax
import jax.numpy as jnp
from jax.experimental import pallas as pl
from jax.experimental.pallas import tpu as pltpu


def _actnorm_kernel(x_ref, scale_ref, loc_ref, y_ref):
    # Per-row (== per-channel) affine: y = scale * (x + loc).
    # scale_ref / loc_ref are (row_blk, 1) resident blocks; lane-broadcast.
    y_ref[...] = scale_ref[...] * (x_ref[...] + loc_ref[...])


def actnorm_forward(x, loc, scale, logdet=True):
    """ActNorm forward.  x: (N, C, H, W);  loc, scale: (1, C, 1, 1)."""
    N, C, H, W = x.shape
    HW = H * W
    NC = N * C

    # logdet = H*W * sum_c log|scale_c|  -- O(C) parameter reduction, plain JAX.
    logdet_val = (float(HW) * jnp.sum(jnp.log(jnp.abs(scale)))).astype(jnp.float32)

    dtype = x.dtype
    itemsize = jnp.dtype(dtype).itemsize
    sub = 16 if itemsize == 2 else 8              # sublane packing unit (bf16 vs f32)

    x2 = x.reshape(NC, HW)

    # Lane padding: keep the last dim a multiple of 128 (unmasked, lane-dense vst).
    HWp = -(-HW // 128) * 128

    # Row tile: multiple of lcm(C, sublane-unit); target ~2 MiB per buffer so
    # (x + y) x double-buffering stays well inside scoped VMEM on v5e/v6e/v7x.
    unit = (C * sub) // math.gcd(C, sub)
    target_bytes = 2 * 1024 * 1024
    rows_for_target = max(unit, (target_bytes // max(1, HWp * itemsize)) // unit * unit)
    rows_needed = -(-NC // unit) * unit
    row_blk = min(rows_for_target, rows_needed)
    NCp = -(-NC // row_blk) * row_blk

    if (NCp != NC) or (HWp != HW):
        x2 = jnp.pad(x2, ((0, NCp - NC), (0, HWp - HW)))

    # Per-row parameter columns for ONE row tile.  row_blk is a multiple of C
    # (and tiles start at multiples of C), so every tile sees the same channel
    # pattern; the block index_map is constant -> loaded once, resident in VMEM.
    scale_rows = jnp.tile(scale.reshape(C, 1).astype(dtype), (row_blk // C, 1))
    loc_rows = jnp.tile(loc.reshape(C, 1).astype(dtype), (row_blk // C, 1))

    grid = (NCp // row_blk,)

    y2 = pl.pallas_call(
        _actnorm_kernel,
        out_shape=jax.ShapeDtypeStruct((NCp, HWp), dtype),
        grid_spec=pltpu.PrefetchScalarGridSpec(
            num_scalar_prefetch=0,
            grid=grid,
            in_specs=[
                pl.BlockSpec((row_blk, HWp), lambda i: (i, 0)),   # x tile (streamed)
                pl.BlockSpec((row_blk, 1), lambda i: (0, 0)),     # scale rows (resident)
                pl.BlockSpec((row_blk, 1), lambda i: (0, 0)),     # loc rows (resident)
            ],
            out_specs=pl.BlockSpec((row_blk, HWp), lambda i: (i, 0)),
        ),
        compiler_params=pltpu.CompilerParams(
            dimension_semantics=("parallel",),
            vmem_limit_bytes=32 * 1024 * 1024,
        ),
    )(x2, scale_rows, loc_rows)

    if (NCp != NC) or (HWp != HW):
        y2 = y2[:NC, :HW]
    y = y2.reshape(N, C, H, W)

    if logdet:
        return y, logdet_val
    return y


def actnorm_init_params(x):
    """Emulate ActNorm.initialize(): data-dependent loc/scale (plain JAX glue)."""
    mean = jnp.mean(x, axis=(0, 2, 3), keepdims=True)
    std = jnp.std(x, axis=(0, 2, 3), keepdims=True, ddof=1)   # torch unbiased std
    loc = -mean
    scale = 1.0 / (std + 1e-6)
    return loc, scale


if __name__ == "__main__":
    key = jax.random.PRNGKey(0)
    N, C, H, W = 2, 4, 16, 16
    x = jax.random.normal(key, (N, C, H, W), dtype=jnp.float32)

    # Deterministic, data-dependent initialization (first training forward).
    loc, scale = actnorm_init_params(x)

    y, logdet = actnorm_forward(x, loc, scale, logdet=True)
    y = jax.block_until_ready(y)
    logdet = jax.block_until_ready(logdet)

    # Pure-JAX reference of the PyTorch forward.
    y_ref = scale * (x + loc)
    logdet_ref = H * W * jnp.sum(jnp.log(jnp.abs(scale)))

    assert y.shape == (N, C, H, W)
    assert jnp.allclose(y, y_ref, atol=1e-5, rtol=1e-5)
    assert jnp.allclose(logdet, logdet_ref, atol=1e-4, rtol=1e-5)

    print("KERNEL_OK")
</pallas_src>

<mosaic_0001>
module attributes {stable_mosaic.version = 11 : i64} {
  func.func @_actnorm_kernel(%arg0: i32, %arg1: memref<8x256xf32, #tpu.memory_space<vmem>>, %arg2: memref<8x1xf32, #tpu.memory_space<vmem>>, %arg3: memref<8x1xf32, #tpu.memory_space<vmem>>, %arg4: memref<8x256xf32, #tpu.memory_space<vmem>>) attributes {dimension_semantics = [#tpu.dimension_semantics<parallel>], iteration_bounds = array<i64: 1>, scalar_prefetch = 0 : i64, scratch_operands = 0 : i64, tpu.core_type = #tpu.core_type<tc>, window_params = [{transform_indices = @transform_0, window_bounds = array<i64: 8, 256>}, {pipeline_mode = #tpu.pipeline_mode<synchronous>, transform_indices = @transform_1, window_bounds = array<i64: 8, 1>}, {pipeline_mode = #tpu.pipeline_mode<synchronous>, transform_indices = @transform_2, window_bounds = array<i64: 8, 1>}, {transform_indices = @transform_3, window_bounds = array<i64: 8, 256>}]} {
    %c0 = arith.constant 0 : index
    %c0_0 = arith.constant 0 : index
    %0 = vector.load %arg2[%c0, %c0_0] : memref<8x1xf32, #tpu.memory_space<vmem>>, vector<8x1xf32>
    %c0_1 = arith.constant 0 : index
    %c0_2 = arith.constant 0 : index
    %1 = vector.load %arg1[%c0_1, %c0_2] : memref<8x256xf32, #tpu.memory_space<vmem>>, vector<8x256xf32>
    %c0_3 = arith.constant 0 : index
    %c0_4 = arith.constant 0 : index
    %2 = vector.load %arg3[%c0_3, %c0_4] : memref<8x1xf32, #tpu.memory_space<vmem>>, vector<8x1xf32>
    %3 = vector.broadcast %2 : vector<8x1xf32> to vector<8x256xf32>
    %4 = arith.addf %1, %3 : vector<8x256xf32>
    %5 = vector.broadcast %0 : vector<8x1xf32> to vector<8x256xf32>
    %6 = arith.mulf %5, %4 : vector<8x256xf32>
    %c0_5 = arith.constant 0 : index
    %c0_6 = arith.constant 0 : index
    %7 = vector.load %arg4[%c0_5, %c0_6] : memref<8x256xf32, #tpu.memory_space<vmem>>, vector<8x256xf32>
    tpu.vector_store %arg4[%c0_5, %c0_6], %6 {strides = array<i32>} : memref<8x256xf32, #tpu.memory_space<vmem>>, vector<8x256xf32>,
    return
  }
  func.func @transform_0(%arg0: i32) -> (i32, i32) {
    %c0_i32 = arith.constant 0 : i32
    %c0_i32_0 = arith.constant 0 : i32
    return %arg0, %c0_i32 : i32, i32
  }
  func.func @transform_1(%arg0: i32) -> (i32, i32) {
    %c0_i32 = arith.constant 0 : i32
    %c0_i32_0 = arith.constant 0 : i32
    %c0_i32_1 = arith.constant 0 : i32
    return %c0_i32, %c0_i32_0 : i32, i32
  }
  func.func @transform_2(%arg0: i32) -> (i32, i32) {
    %c0_i32 = arith.constant 0 : i32
    %c0_i32_0 = arith.constant 0 : i32
    %c0_i32_1 = arith.constant 0 : i32
    return %c0_i32, %c0_i32_0 : i32, i32
  }
  func.func @transform_3(%arg0: i32) -> (i32, i32) {
    %c0_i32 = arith.constant 0 : i32
    %c0_i32_0 = arith.constant 0 : i32
    return %arg0, %c0_i32 : i32, i32
  }
}

</mosaic_0001>

<llo_original>
// kernel: tpu_custom_call.1
$region0: #{tpu_custom_call.1}
  #allocation0 [shape = 'u32[]', space=smem, size = 0x4, offset = 0x4, fixed_abs, tag = 'smem constant byte address 0x4 - core index']
  #allocation1 [shape = 'u32[144,128]{1,0:T(1,128)}', space=vmem, size = 0x12000, scoped, tag = 'internal scratch']
  %s0 = inlined_call_operand.vmem [shape: f32[8,256], index: 0, kind: input, shape index: {}]
  %s1 = inlined_call_operand.vmem [shape: f32[8,1], index: 1, kind: input, shape index: {}]
  %s2 = inlined_call_operand.vmem [shape: f32[8,1], index: 2, kind: input, shape index: {}]
  %s3 = inlined_call_operand.hbm [shape: f32[8,256], index: 3, kind: output, shape index: {}]
  %s4 = sld [smem:[#allocation0]]
  $region22: #{tpu_custom_call.1} parent=0
    _
  %s6 = ssub.s32 1, %s4
  %s7 = scalar_select 0, %s6, %s4
  $region1: #{tpu_custom_call.1} parent=0
    #allocation2 [shape = 'u8[8192]{0}', space=vmem, size = 0x2000, scoped, tag = 'output window, operand 0, single buffered']
    #allocation3 [shape = 's32[1]{0}', space=sflag, size = 0x4, scoped, tag = 'scoped memory for tpu_custom_call.1']
    %8 = vsyncpa [#allocation3], 0
    // Predicated region
    $region2: #{tpu_custom_call.1} parent=1 // pred_check
      _
    $region3: #{tpu_custom_call.1} parent=1 // pred_check_branch
      %10 = sbr.rel (0) target = $region5
    $region4: #{tpu_custom_call.1} parent=1 // pred_region
      _
    $region5: #{tpu_custom_call.1} parent=1 // pred_fallthru
      _
    // Predicated region
    $region6: #{tpu_custom_call.1} parent=1 // pred_check
      _
    $region7: #{tpu_custom_call.1} parent=1 // pred_check_branch
      %12 = sbr.rel (0) target = $region9
    $region8: #{tpu_custom_call.1} parent=1 // pred_region
      _
    $region9: #{tpu_custom_call.1} parent=1 // pred_fallthru
      _
    // Predicated region
    $region10: #{tpu_custom_call.1} parent=1 // pred_check
      _
    $region11: #{tpu_custom_call.1} parent=1 // pred_check_branch
      %14 = sbr.rel (0) target = $region13
    $region12: #{tpu_custom_call.1} parent=1 // pred_region
      _
    $region13: #{tpu_custom_call.1} parent=1 // pred_fallthru
      _
    %v15 = vld [vmem:[%s1] sm:$0xff]
    %v16 = vld [vmem:[%s0] sm:$0xff]
    %v17 = vld [vmem:[%s0 + $0x8] sm:$0xff]
    %v18 = vld [vmem:[%s2] sm:$0xff]
    %20 = vset.pattern.permute.xlu0 0
    %21 = vperm.xlu0 %20, %v18
    %v22 = vpop.permute.xlu0 %21
    %v24 = vadd.f32 %v16, %v22
    %v25 = vadd.f32 %v17, %v22
    %27 = vset.pattern.permute.xlu0 0
    %28 = vperm.xlu0 %27, %v15
    %v29 = vpop.permute.xlu0 %28
    %v31 = vmul.f32 %v29, %v24
    %v32 = vmul.f32 %v29, %v25
    %33 = vst [vmem:[#allocation2] sm:$0xff] %v31
    %34 = vst [vmem:[#allocation2 + $0x8] sm:$0xff] %v32
    // Predicated region
    $region14: #{tpu_custom_call.1} parent=1 // pred_check
      _
    $region15: #{tpu_custom_call.1} parent=1 // pred_check_branch
      %36 = sbr.rel (0) target = $region17
    $region16: #{tpu_custom_call.1} parent=1 // pred_region
      %s38 = ssub.s32 256, 256
      %39 = vsyncadd [#allocation3], %s38
      %s41 = sshll.u32 [#allocation2], 4
      %s42 = int_to_ptr.vmem [resolvable:$true] %s41
      %44 = dma.vmem_to_hbm [thread:$0]  %s42, 256, %s3, [#allocation3]
    $region17: #{tpu_custom_call.1} parent=1 // pred_fallthru
      _
    // Predicated region
    $region18: #{tpu_custom_call.1} parent=1 // pred_check
      _
    $region19: #{tpu_custom_call.1} parent=1 // pred_check_branch
      %46 = sbr.rel (0) target = $region21
    $region20: #{tpu_custom_call.1} parent=1 // pred_region
      %47 = dma.done [#allocation3], 256
    $region21: #{tpu_custom_call.1} parent=1 // pred_fallthru
      _
    %48 = vsyncpa [#allocation3], 1

</llo_original>
